<compile_context>
chip_gen: v7x
topology: tpu7x:2x2x1
jax: 0.10.0
libtpu: 0.0.40
codegen_flags: <defaults>
</compile_context>

<pallas_src>
import jax
import jax.numpy as jnp
from jax import lax
from jax.experimental import pallas as pl
from jax.experimental.pallas import tpu as pltpu


# ----------------------------------------------------------------------------
# Fused kernel: feat_proj + scaled correlation + softmax + max/argmax.
# ----------------------------------------------------------------------------
def _make_fused_corr_kernel(reduce_axis, d_model):
    scale = 1.0 / (float(d_model) ** 0.5)
    big = jnp.iinfo(jnp.int32).max

    def kernel(x0_ref, x1_ref, w_ref, b_ref, val_ref, ind_ref):
        w = w_ref[...].astype(jnp.bfloat16)                 # (Din, D)
        bias = b_ref[...]                                    # (1, D) f32

        # --- fused feat_proj (nn.Linear Din -> D) --------------------------
        # bf16 MXU operands, f32 accumulation; bias add stays in f32 (VPU).
        f0 = jnp.dot(x0_ref[0].astype(jnp.bfloat16), w,
                     preferred_element_type=jnp.float32) + bias     # (N, D)
        f1 = jnp.dot(x1_ref[0].astype(jnp.bfloat16), w,
                     preferred_element_type=jnp.float32) + bias     # (M, D)

        # Fold 1/sqrt(D) into f0: N*D multiplies instead of N*M.
        f0 = f0 * scale

        # --- correlation: contract last dims directly (no transpose of f1) -
        corr = lax.dot_general(
            f0.astype(jnp.bfloat16), f1.astype(jnp.bfloat16),
            (((1,), (1,)), ((), ())),
            preferred_element_type=jnp.float32)                     # (N, M)

        cmax = jnp.max(corr, axis=-1, keepdims=True)                # (N, 1)

        if reduce_axis == 1:
            # max/argmax of the softmax along its own (last) axis:
            #   argmax(softmax(corr,-1), -1) == argmax(corr, -1)   (monotone)
            #   max(softmax(corr,-1), -1)    == 1 / sum(exp(corr - rowmax))
            # so prob is never materialized and only ~3 (N,M) temps are live.
            iota = lax.broadcasted_iota(jnp.int32, corr.shape, 1)
            ind = jnp.min(jnp.where(corr == cmax, iota, big), axis=1)   # (N,)
            denom = jnp.sum(jnp.exp(corr - cmax), axis=-1)               # (N,)
            val = pl.reciprocal(denom, approx=True)                      # (N,)
        else:
            # max over rows of the row-normalized prob: prob is required.
            e = jnp.exp(corr - cmax)                                     # (N, M)
            prob = e * pl.reciprocal(
                jnp.sum(e, axis=-1, keepdims=True), approx=True)        # (N, M)
            pmax = jnp.max(prob, axis=0, keepdims=True)                  # (1, M)
            iota = lax.broadcasted_iota(jnp.int32, prob.shape, 0)
            ind = jnp.min(jnp.where(prob == pmax, iota, big), axis=0)    # (M,)
            val = pmax[0]                                                # (M,)

        val_ref[0, 0, :] = val
        ind_ref[0, 0, :] = ind

    return kernel


def fused_corr_max_pallas(x0, x1, w, b, *, reduce_axis):
    """x0: (B, N, Din), x1: (B, M, Din) raw backbone feats; w: (Din, D); b: (D,).

    Applies feat_proj + scaled correlation + softmax + max/argmax fused.
    reduce_axis: 0 -> reduce over N (length-M result), 1 -> over M (length-N).
    """
    B, N, Din = x0.shape
    _, M, _ = x1.shape
    D = w.shape[1]
    L = M if reduce_axis == 0 else N
    b2 = b.reshape(1, D)
    kernel = _make_fused_corr_kernel(reduce_axis, D)
    val, ind = pl.pallas_call(
        kernel,
        out_shape=(
            jax.ShapeDtypeStruct((B, 1, L), jnp.float32),
            jax.ShapeDtypeStruct((B, 1, L), jnp.int32),
        ),
        grid_spec=pltpu.PrefetchScalarGridSpec(
            num_scalar_prefetch=0,
            grid=(B,),
            in_specs=[
                pl.BlockSpec((1, N, Din), lambda bi: (bi, 0, 0)),
                pl.BlockSpec((1, M, Din), lambda bi: (bi, 0, 0)),
                pl.BlockSpec((Din, D), lambda bi: (0, 0)),
                pl.BlockSpec((1, D), lambda bi: (0, 0)),
            ],
            out_specs=[
                pl.BlockSpec((1, 1, L), lambda bi: (bi, 0, 0)),
                pl.BlockSpec((1, 1, L), lambda bi: (bi, 0, 0)),
            ],
        ),
        # batch axis parallel -> one frame-pair per TensorCore on v7x megacore.
        compiler_params=pltpu.CompilerParams(dimension_semantics=("parallel",)),
    )(x0, x1, w, b2)
    return val[:, 0, :], ind[:, 0, :]


# ----------------------------------------------------------------------------
# Weighted Kabsch (compute_rigid_transform).  SVD has no Pallas equivalent;
# this tiny (B,3,3) problem stays in plain JAX.
# ----------------------------------------------------------------------------
def compute_rigid_transform(a, b, weights):
    """a, b: (B, N, 3), weights: (B, N) -> T: (B, 3, 4)."""
    w = weights[:, :, None]
    w = w / (jnp.sum(w, axis=1, keepdims=True) + 1e-8)
    centroid_a = jnp.sum(a * w, axis=1, keepdims=True)
    centroid_b = jnp.sum(b * w, axis=1, keepdims=True)
    a_c = a - centroid_a
    b_c = b - centroid_b
    cov = jnp.einsum("bni,bnj->bij", a_c * w, b_c)
    u, _, vT = jnp.linalg.svd(cov)
    v = jnp.swapaxes(vT, -1, -2)
    uT = jnp.swapaxes(u, -1, -2)
    det = jnp.linalg.det(v @ uT)
    diag = jnp.stack([jnp.ones_like(det), jnp.ones_like(det), det], axis=-1)
    rot = (v * diag[:, None, :]) @ uT
    trans = jnp.swapaxes(centroid_b, -1, -2) - rot @ jnp.swapaxes(centroid_a, -1, -2)
    return jnp.concatenate([rot, trans], axis=-1)


def softmax_correlation_fused(x0, x1, pts0, pts1, w, b):
    """Reference softmax_correlation, with feat_proj fused into the kernel.

    x0/x1 are RAW backbone features (B, N, Din) / (B, M, Din)."""
    B, n, _ = x0.shape
    _, m, _ = x1.shape
    if n > m:
        val, ind = fused_corr_max_pallas(x0, x1, w, b, reduce_axis=0)   # (B, m)
        src_pts = jnp.take_along_axis(
            pts0, jnp.broadcast_to(ind[:, :, None], (B, m, 3)), axis=1)
        tgt_pts = pts1
    else:
        val, ind = fused_corr_max_pallas(x0, x1, w, b, reduce_axis=1)   # (B, n)
        tgt_pts = jnp.take_along_axis(
            pts1, jnp.broadcast_to(ind[:, :, None], (B, n, 3)), axis=1)
        src_pts = pts0
    return compute_rigid_transform(src_pts, tgt_pts, weights=val)


def split_src_tgt(feats, stack_lengths, axis=0):
    B = len(stack_lengths) // 2
    offsets = [0]
    for l in stack_lengths:
        offsets.append(offsets[-1] + l)
    parts = [lax.slice_in_dim(feats, offsets[i], offsets[i + 1], axis=axis)
             for i in range(len(stack_lengths))]
    return parts[:B], parts[B:]


# ----------------------------------------------------------------------------
# DLO_net_single forward (synthetic front-end, fused Pallas hot path).
# ----------------------------------------------------------------------------
def dlo_net_single_forward(feats_un, points_c, stack_lengths_c, proj_w, proj_b):
    """
    feats_un:  (sum(stack_lengths_c), Din)   synthetic KPFEncoder output
    points_c:  (sum(stack_lengths_c), 3)     coarse-level coordinates
    """
    # TODO(synk): PreprocessorGPU / KPFEncoder (KPConv backbone) are external
    # modules with no provided definition; their output is supplied as feats_un.
    prev_feat_list, curr_feat_list = split_src_tgt(feats_un, stack_lengths_c)
    prev_crd_list, curr_crd_list = split_src_tgt(points_c, stack_lengths_c)

    # pad_sequence: equal per-group lengths in this synthetic setup, so padding
    # is a plain stack (all padding masks False).
    # TODO(synk): unequal per-frame lengths need an additive -inf validity mask
    # before the in-kernel softmax.
    prev_feats = jnp.stack(prev_feat_list, axis=0)           # (B, N, Din)
    curr_feats = jnp.stack(curr_feat_list, axis=0)           # (B, M, Din)
    padded_prev_coords = jnp.stack(prev_crd_list, axis=0)    # (B, N, 3)
    padded_curr_coords = jnp.stack(curr_crd_list, axis=0)    # (B, M, 3)

    # TODO(synk): Cross_Attention_Model is not provided; identity pass-through.
    # feat_proj (nn.Linear) is row-wise, so applying it after split_src_tgt
    # inside the fused kernel is identical to projecting the stacked tensor.
    return softmax_correlation_fused(prev_feats, curr_feats,
                                     padded_prev_coords, padded_curr_coords,
                                     proj_w, proj_b)


if __name__ == "__main__":
    key = jax.random.PRNGKey(0)
    k_feat, k_pts, k_w, k_b, k_feat2, k_pts2 = jax.random.split(key, 6)

    # synthetic config: cfg.input_dim = 32, backbone.encoder_skip_dims[-1] = 64
    D_IN_BACKBONE = 64
    D_MODEL = 32
    B_PAIRS = 2           # number of (prev, curr) frame pairs
    N_POINTS = 128        # coarse points per frame

    # deterministic feat_proj parameters (nn.Linear(64, 32, bias=True))
    proj_w = (jax.random.normal(k_w, (D_IN_BACKBONE, D_MODEL), dtype=jnp.float32)
              * (1.0 / D_IN_BACKBONE ** 0.5))
    proj_b = jax.random.normal(k_b, (D_MODEL,), dtype=jnp.float32) * 0.01

    # Case 1: equal frame sizes (n == m -> reduce over last axis, prob fused away).
    stack_lengths_c = [N_POINTS] * (2 * B_PAIRS)
    total = sum(stack_lengths_c)
    feats_un = jax.random.normal(k_feat, (total, D_IN_BACKBONE), dtype=jnp.float32)
    points_c = jax.random.normal(k_pts, (total, 3), dtype=jnp.float32)

    T = dlo_net_single_forward(feats_un, points_c, stack_lengths_c, proj_w, proj_b)
    T = jax.block_until_ready(T)
    assert T.shape == (B_PAIRS, 3, 4)
    assert bool(jnp.all(jnp.isfinite(T)))

    # Case 2: prev frames larger than curr frames (n > m -> reduce over rows).
    stack_lengths_c2 = [256, 256, 128, 128]
    total2 = sum(stack_lengths_c2)
    feats_un2 = jax.random.normal(k_feat2, (total2, D_IN_BACKBONE), dtype=jnp.float32)
    points_c2 = jax.random.normal(k_pts2, (total2, 3), dtype=jnp.float32)

    T2 = dlo_net_single_forward(feats_un2, points_c2, stack_lengths_c2, proj_w, proj_b)
    T2 = jax.block_until_ready(T2)
    assert T2.shape == (2, 3, 4)
    assert bool(jnp.all(jnp.isfinite(T2)))

    print("KERNEL_OK")
</pallas_src>

<mosaic_0001>
module attributes {stable_mosaic.version = 11 : i64} {
  func.func @kernel(%arg0: i32, %arg1: memref<1x128x64xf32, #tpu.memory_space<vmem>>, %arg2: memref<1x128x64xf32, #tpu.memory_space<vmem>>, %arg3: memref<64x32xf32, #tpu.memory_space<vmem>>, %arg4: memref<1x32xf32, #tpu.memory_space<vmem>>, %arg5: memref<1x1x128xf32, #tpu.memory_space<vmem>>, %arg6: memref<1x1x128xi32, #tpu.memory_space<vmem>>) attributes {dimension_semantics = [#tpu.dimension_semantics<parallel>], iteration_bounds = array<i64: 2>, scalar_prefetch = 0 : i64, scratch_operands = 0 : i64, tpu.core_type = #tpu.core_type<tc>, window_params = [{transform_indices = @transform_0, window_bounds = array<i64: 1, 128, 64>}, {transform_indices = @transform_1, window_bounds = array<i64: 1, 128, 64>}, {pipeline_mode = #tpu.pipeline_mode<synchronous>, transform_indices = @transform_2, window_bounds = array<i64: 64, 32>}, {pipeline_mode = #tpu.pipeline_mode<synchronous>, transform_indices = @transform_3, window_bounds = array<i64: 1, 32>}, {transform_indices = @transform_4, window_bounds = array<i64: 1, 1, 128>}, {transform_indices = @transform_5, window_bounds = array<i64: 1, 1, 128>}]} {
    %c0 = arith.constant 0 : index
    %c0_0 = arith.constant 0 : index
    %0 = vector.load %arg3[%c0, %c0_0] : memref<64x32xf32, #tpu.memory_space<vmem>>, vector<64x32xf32>
    %1 = arith.truncf %0 : vector<64x32xf32> to vector<64x32xbf16>
    %c0_1 = arith.constant 0 : index
    %c0_2 = arith.constant 0 : index
    %2 = vector.load %arg4[%c0_1, %c0_2] : memref<1x32xf32, #tpu.memory_space<vmem>>, vector<1x32xf32>
    %c0_3 = arith.constant 0 : index
    %c0_4 = arith.constant 0 : index
    %c0_5 = arith.constant 0 : index
    %3 = vector.load %arg1[%c0_3, %c0_4, %c0_5] : memref<1x128x64xf32, #tpu.memory_space<vmem>>, vector<1x128x64xf32>
    %4 = vector.shape_cast %3 : vector<1x128x64xf32> to vector<128x64xf32>
    %5 = arith.truncf %4 : vector<128x64xf32> to vector<128x64xbf16>
    %cst = arith.constant dense<0.000000e+00> : vector<128x32xf32>
    %6 = tpu.matmul %5, %1, %cst {dimension_numbers = #tpu.dot_dimension_numbers<[1], [0], [0], [1], [0, 0, 1, 1], [], []>} : vector<128x64xbf16>, vector<64x32xbf16>, vector<128x32xf32> -> vector<128x32xf32>
    %7 = vector.broadcast %2 : vector<1x32xf32> to vector<128x32xf32>
    %8 = arith.addf %6, %7 : vector<128x32xf32>
    %c0_6 = arith.constant 0 : index
    %c0_7 = arith.constant 0 : index
    %c0_8 = arith.constant 0 : index
    %9 = vector.load %arg2[%c0_6, %c0_7, %c0_8] : memref<1x128x64xf32, #tpu.memory_space<vmem>>, vector<1x128x64xf32>
    %10 = vector.shape_cast %9 : vector<1x128x64xf32> to vector<128x64xf32>
    %11 = arith.truncf %10 : vector<128x64xf32> to vector<128x64xbf16>
    %cst_9 = arith.constant dense<0.000000e+00> : vector<128x32xf32>
    %12 = tpu.matmul %11, %1, %cst_9 {dimension_numbers = #tpu.dot_dimension_numbers<[1], [0], [0], [1], [0, 0, 1, 1], [], []>} : vector<128x64xbf16>, vector<64x32xbf16>, vector<128x32xf32> -> vector<128x32xf32>
    %13 = vector.broadcast %2 : vector<1x32xf32> to vector<128x32xf32>
    %14 = arith.addf %12, %13 : vector<128x32xf32>
    %cst_10 = arith.constant 0.176776692 : f32
    %15 = vector.broadcast %cst_10 : f32 to vector<128x32xf32>
    %16 = arith.mulf %8, %15 : vector<128x32xf32>
    %17 = arith.truncf %16 : vector<128x32xf32> to vector<128x32xbf16>
    %18 = arith.truncf %14 : vector<128x32xf32> to vector<128x32xbf16>
    %cst_11 = arith.constant dense<0.000000e+00> : vector<128x128xf32>
    %19 = tpu.matmul %17, %18, %cst_11 {dimension_numbers = #tpu.dot_dimension_numbers<[1], [1], [0], [0], [0, 0, 1, 0], [], []>} : vector<128x32xbf16>, vector<128x32xbf16>, vector<128x128xf32> -> vector<128x128xf32>
    %cst_12 = arith.constant dense<0xFF800000> : vector<128xf32>
    %20 = vector.multi_reduction <maximumf>, %19, %cst_12 [1] : vector<128x128xf32> to vector<128xf32>
    %21 = vector.shape_cast %20 : vector<128xf32> to vector<128x1xf32>
    %22 = tpu.iota {dimensions = array<i32: 1>} : vector<128x128xi32>
    %23 = vector.broadcast %21 : vector<128x1xf32> to vector<128x128xf32>
    %24 = arith.cmpf oeq, %19, %23 : vector<128x128xf32>
    %c2147483647_i32 = arith.constant 2147483647 : i32
    %25 = vector.broadcast %c2147483647_i32 : i32 to vector<128x128xi32>
    %26 = arith.select %24, %22, %25 : vector<128x128xi1>, vector<128x128xi32>
    %cst_13 = arith.constant dense<2147483647> : vector<128xi32>
    %27 = vector.multi_reduction <minsi>, %26, %cst_13 [1] : vector<128x128xi32> to vector<128xi32>
    %28 = vector.broadcast %21 : vector<128x1xf32> to vector<128x128xf32>
    %29 = arith.subf %19, %28 : vector<128x128xf32>
    %30 = math.exp %29 : vector<128x128xf32>
    %cst_14 = arith.constant dense<0.000000e+00> : vector<128xf32>
    %31 = vector.multi_reduction <add>, %30, %cst_14 [1] : vector<128x128xf32> to vector<128xf32>
    %32 = tpu.reciprocal %31 {approx = true} : vector<128xf32> -> vector<128xf32>
    %c0_15 = arith.constant 0 : index
    %c0_16 = arith.constant 0 : index
    %c0_17 = arith.constant 0 : index
    %33 = vector.load %arg5[%c0_15, %c0_16, %c0_17] : memref<1x1x128xf32, #tpu.memory_space<vmem>>, vector<1x1x128xf32>
    %34 = vector.shape_cast %33 : vector<1x1x128xf32> to vector<128xf32>
    %35 = vector.shape_cast %32 : vector<128xf32> to vector<1x1x128xf32>
    tpu.vector_store %arg5[%c0_15, %c0_16, %c0_17], %35 {strides = array<i32>} : memref<1x1x128xf32, #tpu.memory_space<vmem>>, vector<1x1x128xf32>,
    %c0_18 = arith.constant 0 : index
    %c0_19 = arith.constant 0 : index
    %c0_20 = arith.constant 0 : index
    %36 = vector.load %arg6[%c0_18, %c0_19, %c0_20] : memref<1x1x128xi32, #tpu.memory_space<vmem>>, vector<1x1x128xi32>
    %37 = vector.shape_cast %36 : vector<1x1x128xi32> to vector<128xi32>
    %38 = vector.shape_cast %27 : vector<128xi32> to vector<1x1x128xi32>
    tpu.vector_store %arg6[%c0_18, %c0_19, %c0_20], %38 {strides = array<i32>} : memref<1x1x128xi32, #tpu.memory_space<vmem>>, vector<1x1x128xi32>,
    return
  }
  func.func @transform_0(%arg0: i32) -> (i32, i32, i32) {
    %c0_i32 = arith.constant 0 : i32
    %c0_i32_0 = arith.constant 0 : i32
    %c0_i32_1 = arith.constant 0 : i32
    return %arg0, %c0_i32, %c0_i32_0 : i32, i32, i32
  }
  func.func @transform_1(%arg0: i32) -> (i32, i32, i32) {
    %c0_i32 = arith.constant 0 : i32
    %c0_i32_0 = arith.constant 0 : i32
    %c0_i32_1 = arith.constant 0 : i32
    return %arg0, %c0_i32, %c0_i32_0 : i32, i32, i32
  }
  func.func @transform_2(%arg0: i32) -> (i32, i32) {
    %c0_i32 = arith.constant 0 : i32
    %c0_i32_0 = arith.constant 0 : i32
    %c0_i32_1 = arith.constant 0 : i32
    return %c0_i32, %c0_i32_0 : i32, i32
  }
  func.func @transform_3(%arg0: i32) -> (i32, i32) {
    %c0_i32 = arith.constant 0 : i32
    %c0_i32_0 = arith.constant 0 : i32
    %c0_i32_1 = arith.constant 0 : i32
    return %c0_i32, %c0_i32_0 : i32, i32
  }
  func.func @transform_4(%arg0: i32) -> (i32, i32, i32) {
    %c0_i32 = arith.constant 0 : i32
    %c0_i32_0 = arith.constant 0 : i32
    %c0_i32_1 = arith.constant 0 : i32
    return %arg0, %c0_i32, %c0_i32_0 : i32, i32, i32
  }
  func.func @transform_5(%arg0: i32) -> (i32, i32, i32) {
    %c0_i32 = arith.constant 0 : i32
    %c0_i32_0 = arith.constant 0 : i32
    %c0_i32_1 = arith.constant 0 : i32
    return %arg0, %c0_i32, %c0_i32_0 : i32, i32, i32
  }
}

</mosaic_0001>

<llo_original>
// kernel: tpu_custom_call.1
$region0: #{tpu_custom_call.1}
  #allocation0 [shape = 'u32[]', space=smem, size = 0x4, offset = 0x4, fixed_abs, tag = 'smem constant byte address 0x4 - core index']
  #allocation1 [shape = 'u32[144,128]{1,0:T(1,128)}', space=vmem, size = 0x12000, scoped, tag = 'internal scratch']
  %s0 = inlined_call_operand.vmem [shape: f32[2,128,64], index: 0, kind: input, shape index: {}]
  %s1 = inlined_call_operand.vmem [shape: f32[2,128,64], index: 1, kind: input, shape index: {}]
  %s2 = inlined_call_operand.vmem [shape: f32[64,32], index: 2, kind: input, shape index: {}]
  %s3 = inlined_call_operand.vmem [shape: f32[1,32], index: 3, kind: input, shape index: {}]
  %s4 = inlined_call_operand.hbm [shape: f32[2,1,128], index: 4, kind: output, shape index: {0}]
  %s5 = inlined_call_operand.hbm [shape: s32[2,1,128], index: 5, kind: output, shape index: {1}]
  %6 = xla_tuple %s4, %s5
  %s7 = sld [smem:[#allocation0]]
  $region57: #{tpu_custom_call.1} parent=0
    _
  %s9 = ssub.s32 1, %s7
  %s10 = scalar_select 0, %s9, %s7
  $region1: #{tpu_custom_call.1} parent=0
    #allocation2 [shape = 'u8[1024]{0}', space=vmem, size = 0x400, scoped, tag = 'output window, operand 0']
    #allocation3 [shape = 's32[2]{0}', space=sflag, size = 0x8, scoped, tag = 'scoped memory for tpu_custom_call.1']
    #allocation4 [shape = 'u8[1024]{0}', space=vmem, size = 0x400, scoped, tag = 'output window, operand 1']
    #allocation5 [shape = 's32[2]{0}', space=sflag, size = 0x8, scoped, tag = 'scoped memory for tpu_custom_call.1']
    %11 = vsyncpa [#allocation3], 0
    %s12 = scalar_lea.sflag [#allocation3], 1
    %13 = vsyncpa %s12, 0
    %14 = vsyncpa [#allocation5], 0
    %s15 = scalar_lea.sflag [#allocation5], 1
    %16 = vsyncpa %s15, 0
    loop: start=0, step=1, limit=4
    $region2: #{tpu_custom_call.1} parent=1 // loop_pre_header
      _
    $region3: #{tpu_custom_call.1} parent=1 // loop_header
      %s18 = sphi 0, %s22
      %p19 = scmp.ge.s32.totalorder %s18, 4
      %s28 = sphi 0, %s30
      %s31 = sphi 0, %s28
      %s32 = sphi 0, %s31
      %s48 = sphi 0, %s32
      %s54 = sphi 0, %s56
      %s57 = sphi 0, %s54
      %s58 = sphi 0, %s57
      %s74 = sphi 0, %s58
      %s78 = sphi 0, %s78
      %s80 = sphi 0, %s78
      %s81 = sphi 0, %s80
      %s95 = sphi 0, %s81
      %s99 = sphi 0, %s99
      %s101 = sphi 0, %s99
      %s102 = sphi 0, %s101
      %s116 = sphi 0, %s102
      %s122 = sphi 0, %s124
      %s125 = sphi 0, %s122
      %s126 = sphi 0, %s125
      %s142 = sphi 0, %s126
      %s148 = sphi 0, %s150
      %s151 = sphi 0, %s148
      %s152 = sphi 0, %s151
      %s168 = sphi 0, %s152
    $region4: #{tpu_custom_call.1} parent=1 // loop_header_branch
      %21 = sbr.rel (%p19) target = $region8
    $region5: #{tpu_custom_call.1} parent=1 // loop_body
      %s23 = ssub.s32 %s18, 1
      %s24 = ssub.s32 %s18, 2
      %s25 = sadd.s32 %s18, 1
      %s26 = ssub.s32 %s18, %s25
      %p27 = scmp.eq.s32.totalorder %s26, 0
      %s29 = sadd.s32 %s28, 1
      %s30 = scalar_select %p27, %s28, %s29
      %p33 = pneg %p27
      %p34 = scmp.eq.s32.totalorder %s18, 1
      %p35 = por %p33, %p34
      %p36 = scmp.ne.s32.totalorder %s28, %s31
      %p37 = scmp.eq.s32.totalorder %s18, 0
      %p38 = por %p36, %p37
      %p39 = scmp.ne.s32.totalorder %s28, %s31
      %p40 = scmp.eq.s32.totalorder %s23, 1
      %p41 = por %p39, %p40
      %p42 = scmp.ne.s32.totalorder %s31, %s32
      %p43 = scmp.eq.s32.totalorder %s23, 0
      %p44 = por %p42, %p43
      %p45 = scmp.ne.s32.totalorder %s31, %s32
      %p46 = scmp.eq.s32.totalorder %s24, 1
      %p47 = por %p45, %p46
      %p49 = scmp.ne.s32.totalorder %s32, %s48
      %p50 = scmp.eq.s32.totalorder %s24, 0
      %p51 = por %p49, %p50
      %s52 = ssub.s32 %s18, %s25
      %p53 = scmp.eq.s32.totalorder %s52, 0
      %s55 = sadd.s32 %s54, 1
      %s56 = scalar_select %p53, %s54, %s55
      %p59 = pneg %p53
      %p60 = scmp.eq.s32.totalorder %s18, 1
      %p61 = por %p59, %p60
      %p62 = scmp.ne.s32.totalorder %s54, %s57
      %p63 = scmp.eq.s32.totalorder %s18, 0
      %p64 = por %p62, %p63
      %p65 = scmp.ne.s32.totalorder %s54, %s57
      %p66 = scmp.eq.s32.totalorder %s23, 1
      %p67 = por %p65, %p66
      %p68 = scmp.ne.s32.totalorder %s57, %s58
      %p69 = scmp.eq.s32.totalorder %s23, 0
      %p70 = por %p68, %p69
      %p71 = scmp.ne.s32.totalorder %s57, %s58
      %p72 = scmp.eq.s32.totalorder %s24, 1
      %p73 = por %p71, %p72
      %p75 = scmp.ne.s32.totalorder %s58, %s74
      %p76 = scmp.eq.s32.totalorder %s24, 0
      %p77 = por %p75, %p76
      %s79 = sadd.s32 %s78, 1
      %p82 = scmp.eq.s32.totalorder %s18, 1
      %p83 = scmp.ne.s32.totalorder %s78, %s80
      %p84 = scmp.eq.s32.totalorder %s18, 0
      %p85 = por %p83, %p84
      %p86 = scmp.ne.s32.totalorder %s78, %s80
      %p87 = scmp.eq.s32.totalorder %s23, 1
      %p88 = por %p86, %p87
      %p89 = scmp.ne.s32.totalorder %s80, %s81
      %p90 = scmp.eq.s32.totalorder %s23, 0
      %p91 = por %p89, %p90
      %p92 = scmp.ne.s32.totalorder %s80, %s81
      %p93 = scmp.eq.s32.totalorder %s24, 1
      %p94 = por %p92, %p93
      %p96 = scmp.ne.s32.totalorder %s81, %s95
      %p97 = scmp.eq.s32.totalorder %s24, 0
      %p98 = por %p96, %p97
      %s100 = sadd.s32 %s99, 1
      %p103 = scmp.eq.s32.totalorder %s18, 1
      %p104 = scmp.ne.s32.totalorder %s99, %s101
      %p105 = scmp.eq.s32.totalorder %s18, 0
      %p106 = por %p104, %p105
      %p107 = scmp.ne.s32.totalorder %s99, %s101
      %p108 = scmp.eq.s32.totalorder %s23, 1
      %p109 = por %p107, %p108
      %p110 = scmp.ne.s32.totalorder %s101, %s102
      %p111 = scmp.eq.s32.totalorder %s23, 0
      %p112 = por %p110, %p111
      %p113 = scmp.ne.s32.totalorder %s101, %s102
      %p114 = scmp.eq.s32.totalorder %s24, 1
      %p115 = por %p113, %p114
      %p117 = scmp.ne.s32.totalorder %s102, %s116
      %p118 = scmp.eq.s32.totalorder %s24, 0
      %p119 = por %p117, %p118
      %s120 = ssub.s32 %s18, %s25
      %p121 = scmp.eq.s32.totalorder %s120, 0
      %s123 = sadd.s32 %s122, 1
      %s124 = scalar_select %p121, %s122, %s123
      %p127 = pneg %p121
      %p128 = scmp.eq.s32.totalorder %s18, 1
      %p129 = por %p127, %p128
      %p130 = scmp.ne.s32.totalorder %s122, %s125
      %p131 = scmp.eq.s32.totalorder %s18, 0
      %p132 = por %p130, %p131
      %p133 = scmp.ne.s32.totalorder %s122, %s125
      %p134 = scmp.eq.s32.totalorder %s23, 1
      %p135 = por %p133, %p134
      %p136 = scmp.ne.s32.totalorder %s125, %s126
      %p137 = scmp.eq.s32.totalorder %s23, 0
      %p138 = por %p136, %p137
      %p139 = scmp.ne.s32.totalorder %s125, %s126
      %p140 = scmp.eq.s32.totalorder %s24, 1
      %p141 = por %p139, %p140
      %p143 = scmp.ne.s32.totalorder %s126, %s142
      %p144 = scmp.eq.s32.totalorder %s24, 0
      %p145 = por %p143, %p144
      %s146 = ssub.s32 %s18, %s25
      %p147 = scmp.eq.s32.totalorder %s146, 0
      %s149 = sadd.s32 %s148, 1
      %s150 = scalar_select %p147, %s148, %s149
      %p153 = pneg %p147
      %p154 = scmp.eq.s32.totalorder %s18, 1
      %p155 = por %p153, %p154
      %p156 = scmp.ne.s32.totalorder %s148, %s151
      %p157 = scmp.eq.s32.totalorder %s18, 0
      %p158 = por %p156, %p157
      %p159 = scmp.ne.s32.totalorder %s148, %s151
      %p160 = scmp.eq.s32.totalorder %s23, 1
      %p161 = por %p159, %p160
      %p162 = scmp.ne.s32.totalorder %s151, %s152
      %p163 = scmp.eq.s32.totalorder %s23, 0
      %p164 = por %p162, %p163
      %p165 = scmp.ne.s32.totalorder %s151, %s152
      %p166 = scmp.eq.s32.totalorder %s24, 1
      %p167 = por %p165, %p166
      %p169 = scmp.ne.s32.totalorder %s152, %s168
      %p170 = scmp.eq.s32.totalorder %s24, 0
      %p171 = por %p169, %p170
      %p172 = scmp.le.s32.totalorder 1, %s18
      %p173 = scmp.lt.s32.totalorder %s18, 3
      %p174 = pnand %p172, %p173
      %p175 = pneg %p174
      // Predicated region
      $region9: #{tpu_custom_call.1} parent=5 // pred_check
        _
      $region10: #{tpu_custom_call.1} parent=5 // pred_check_branch
        %177 = sbr.rel (%p174) target = $region12
      $region11: #{tpu_custom_call.1} parent=5 // pred_region
        %s178 = ssub.s32 %s18, 1
        // Predicated region
        $region13: #{tpu_custom_call.1} parent=11 // pred_check
          %p179 = pneg %p91
        $region14: #{tpu_custom_call.1} parent=11 // pred_check_branch
          %181 = sbr.rel (%p179) target = $region16
        $region15: #{tpu_custom_call.1} parent=11 // pred_region
          _
        $region16: #{tpu_custom_call.1} parent=11 // pred_fallthru
          _
        // Predicated region
        $region17: #{tpu_custom_call.1} parent=11 // pred_check
          %p182 = pneg %p112
        $region18: #{tpu_custom_call.1} parent=11 // pred_check_branch
          %184 = sbr.rel (%p182) target = $region20
        $region19: #{tpu_custom_call.1} parent=11 // pred_region
          _
        $region20: #{tpu_custom_call.1} parent=11 // pred_fallthru
          _
      $region12: #{tpu_custom_call.1} parent=5 // pred_fallthru
        _
      %p185 = scmp.lt.s32.totalorder %s18, 2
      // Predicated region
      $region21: #{tpu_custom_call.1} parent=5 // pred_check
        %p186 = pneg %p185
      $region22: #{tpu_custom_call.1} parent=5 // pred_check_branch
        %188 = sbr.rel (%p186) target = $region24
      $region23: #{tpu_custom_call.1} parent=5 // pred_region
        // Predicated region
        $region25: #{tpu_custom_call.1} parent=23 // pred_check
          %p189 = pneg %p38
        $region26: #{tpu_custom_call.1} parent=23 // pred_check_branch
          %191 = sbr.rel (%p189) target = $region28
        $region27: #{tpu_custom_call.1} parent=23 // pred_region
          %p192 = scmp.lt.s32.totalorder %s18, 1
          %s193 = scalar_select %p192, %s18, 1
          %s194 = smul.addr %s193, 16
          %s195 = smul.addr %s194, 8
          %s196 = scalar_lea.vmem %s0, %s195
        $region28: #{tpu_custom_call.1} parent=23 // pred_fallthru
          _
        // Predicated region
        $region29: #{tpu_custom_call.1} parent=23 // pred_check
          %p197 = pneg %p64
        $region30: #{tpu_custom_call.1} parent=23 // pred_check_branch
          %199 = sbr.rel (%p197) target = $region32
        $region31: #{tpu_custom_call.1} parent=23 // pred_region
          %p200 = scmp.lt.s32.totalorder %s18, 1
          %s201 = scalar_select %p200, %s18, 1
          %s202 = smul.addr %s201, 16
          %s203 = smul.addr %s202, 8
          %s204 = scalar_lea.vmem %s1, %s203
        $region32: #{tpu_custom_call.1} parent=23 // pred_fallthru
          _
      $region24: #{tpu_custom_call.1} parent=5 // pred_fallthru
        _
      %p205 = scmp.le.s32.totalorder 1, %s18
      %p206 = scmp.lt.s32.totalorder %s18, 3
      %p207 = pnand %p205, %p206
      %p208 = pneg %p207
      // Predicated region
      $region33: #{tpu_custom_call.1} parent=5 // pred_check
        _
      $region34: #{tpu_custom_call.1} parent=5 // pred_check_branch
        %210 = sbr.rel (%p207) target = $region36
      $region35: #{tpu_custom_call.1} parent=5 // pred_region
        %s211 = ssub.s32 %s18, 1
        %p212 = scmp.lt.s32.totalorder %s23, 1
        %s213 = scalar_select %p212, %s23, 1
        %s214 = smul.addr %s213, 16
        %s215 = smul.addr %s214, 8
        %s216 = scalar_lea.vmem %s0, %s215
        %p217 = pneg %p44
        %p218 = pneg %p41
        %p219 = scmp.lt.s32.totalorder %s23, 1
        %s220 = scalar_select %p219, %s23, 1
        %s221 = smul.addr %s220, 16
        %s222 = smul.addr %s221, 8
        %s223 = scalar_lea.vmem %s1, %s222
        %p224 = pneg %p70
        %p225 = pneg %p67
        %p226 = pneg %p91
        %p227 = pneg %p88
        %p228 = pneg %p112
        %p229 = pneg %p109
        %p230 = pneg %p138
        %p231 = pneg %p135
        %s232 = sand.u32 %s125, 1
        %s233 = scalar_lea.sflag [#allocation3], %s232
        %s234 = sand.u32 %s125, 1
        %s235 = scalar_lea.vmem [#allocation2], %s234
        %p236 = pneg %p164
        %p237 = pneg %p161
        %s238 = sand.u32 %s151, 1
        %s239 = scalar_lea.sflag [#allocation5], %s238
        %s240 = sand.u32 %s151, 1
        %s241 = scalar_lea.vmem [#allocation4], %s240
        %p242 = scmp.lt.s32.totalorder %s23, 1
        %s243 = scalar_select %p242, %s23, 1
        %s244 = smul.addr %s243, 16
        %s245 = smul.addr %s244, 8
        %s246 = scalar_lea.vmem %s0, %s245
        %p247 = scmp.lt.s32.totalorder %s23, 1
        %s248 = scalar_select %p247, %s23, 1
        %s249 = smul.addr %s248, 16
        %s250 = smul.addr %s249, 8
        %s251 = scalar_lea.vmem %s1, %s250
        %v253 = vld [vmem:[%s2] sm:$0xff]
        %v254 = vld [vmem:[%s2 + $0x8] sm:$0xff]
        %v255 = vld [vmem:[%s2 + $0x10] sm:$0xff]
        %v256 = vld [vmem:[%s2 + $0x18] sm:$0xff]
        %v257 = vld [vmem:[%s2 + $0x20] sm:$0xff]
        %v258 = vld [vmem:[%s2 + $0x28] sm:$0xff]
        %v259 = vld [vmem:[%s2 + $0x30] sm:$0xff]
        %v260 = vld [vmem:[%s2 + $0x38] sm:$0xff]
        %v261 = vpack.c.bf16 %v254, %v253
        %v262 = vpack.c.bf16 %v256, %v255
        %v263 = vpack.c.bf16 %v258, %v257
        %v264 = vpack.c.bf16 %v260, %v259
        %v265 = vld [vmem:[%s3] sm:$0x1]
        %v266 = vld [vmem:[%s246] sm:$0xff]
        %v267 = vld [vmem:[%s246 + $0x8] sm:$0xff]
        %v268 = vld [vmem:[%s246 + $0x10] sm:$0xff]
        %v269 = vld [vmem:[%s246 + $0x18] sm:$0xff]
        %v270 = vld [vmem:[%s246 + $0x20] sm:$0xff]
        %v271 = vld [vmem:[%s246 + $0x28] sm:$0xff]
        %v272 = vld [vmem:[%s246 + $0x30] sm:$0xff]
        %v273 = vld [vmem:[%s246 + $0x38] sm:$0xff]
        %v274 = vld [vmem:[%s246 + $0x40] sm:$0xff]
        %v275 = vld [vmem:[%s246 + $0x48] sm:$0xff]
        %v276 = vld [vmem:[%s246 + $0x50] sm:$0xff]
        %v277 = vld [vmem:[%s246 + $0x58] sm:$0xff]
        %v278 = vld [vmem:[%s246 + $0x60] sm:$0xff]
        %v279 = vld [vmem:[%s246 + $0x68] sm:$0xff]
        %v280 = vld [vmem:[%s246 + $0x70] sm:$0xff]
        %v281 = vld [vmem:[%s246 + $0x78] sm:$0xff]
        %v282 = vpack.c.bf16 %v267, %v266
        %v283 = vpack.c.bf16 %v269, %v268
        %v284 = vpack.c.bf16 %v271, %v270
        %v285 = vpack.c.bf16 %v273, %v272
        %v286 = vpack.c.bf16 %v275, %v274
        %v287 = vpack.c.bf16 %v277, %v276
        %v288 = vpack.c.bf16 %v279, %v278
        %v289 = vpack.c.bf16 %v281, %v280
        %v291 = vlaneseq
        %v292 = vshrl.u32 %v291, 7
        %v293 = vsub.s32 0, %v292
        %v294 = vrot.slane %v265, %v293
        %vm296 = vcmask 523264
        %v298 = vsel %vm296, %v282, 0
        %v301 = vsel %vm296, %v283, 0
        %v304 = vsel %vm296, %v284, 0
        %v307 = vsel %vm296, %v285, 0
        %v310 = vsel %vm296, %v286, 0
        %v313 = vsel %vm296, %v287, 0
        %v316 = vsel %vm296, %v288, 0
        %v319 = vsel %vm296, %v289, 0
        %321 = vmatprep.subr.bf16.mxu0 0
        %322 = vmatpush1.bf16.msra.mxu0 %v261
        %323 = vmatprep.subr.bf16.mxu0 0
        %324 = vmatpush1.bf16.msra.mxu0 %v262
        %325 = vmatprep.subr.bf16.mxu0 0
        %326 = vmatpush1.bf16.msra.mxu0 %v263
        %327 = vmatprep.subr.bf16.mxu0 0
        %328 = vmatpush1.bf16.msra.mxu0 %v264
        %329 = vmatprep.subr.bf16.mxu0 0
        %330 = vmatpush1.bf16.msra.mxu0 0
        %331 = vmatprep.subr.bf16.mxu0 0
        %332 = vmatpush1.bf16.msra.mxu0 0
        %333 = vmatprep.subr.bf16.mxu0 0
        %334 = vmatpush1.bf16.msra.mxu0 0
        %335 = vmatprep.subr.bf16.mxu0 0
        %336 = vmatpush1.bf16.msra.mxu0 0
        %337 = vmatprep.subr.bf16.mxu0 0
        %338 = vmatpush1.bf16.msra.mxu0 0
        %339 = vmatprep.subr.bf16.mxu0 0
        %340 = vmatpush1.bf16.msra.mxu0 0
        %341 = vmatprep.subr.bf16.mxu0 0
        %342 = vmatpush1.bf16.msra.mxu0 0
        %343 = vmatprep.subr.bf16.mxu0 0
        %344 = vmatpush1.bf16.msra.mxu0 0
        %345 = vmatprep.subr.bf16.mxu0 0
        %346 = vmatpush1.bf16.msra.mxu0 0
        %347 = vmatprep.subr.bf16.mxu0 0
        %348 = vmatpush1.bf16.msra.mxu0 0
        %349 = vmatprep.subr.bf16.mxu0 0
        %350 = vmatpush1.bf16.msra.mxu0 0
        %351 = vmatprep.subr.bf16.mxu0 0
        %352 = vmatpush1.bf16.msra.mxu0 0
        %353 = vmatprep.mubr.bf16.mxu0 0
        %354 = vmatmul.mubr.bf16.gmra.mrb[0].mxu0 %v298
        %v355 = vpop.f32.mrb[0].mxu0
        %v356 = vadd.f32 %v294, %v355
        %v357 = vpop.f32.mrb[0].mxu0
        %v358 = vpop.f32.mrb[0].mxu0
        %v359 = vadd.f32 %v294, %v358
        %v360 = vpop.f32.mrb[0].mxu0
        %361 = vmatprep.mubr.bf16.mxu0 0
        %362 = vmatmul.mubr.bf16.gmra.mrb[0].mxu0 %v301
        %v363 = vpop.f32.mrb[0].mxu0
        %v364 = vadd.f32 %v294, %v363
        %v365 = vpop.f32.mrb[0].mxu0
        %v366 = vpop.f32.mrb[0].mxu0
        %v367 = vadd.f32 %v294, %v366
        %v368 = vpop.f32.mrb[0].mxu0
        %369 = vmatprep.mubr.bf16.mxu0 0
        %370 = vmatmul.mubr.bf16.gmra.mrb[0].mxu0 %v304
        %v371 = vpop.f32.mrb[0].mxu0
        %v372 = vadd.f32 %v294, %v371
        %v373 = vpop.f32.mrb[0].mxu0
        %v374 = vpop.f32.mrb[0].mxu0
        %v375 = vadd.f32 %v294, %v374
        %v376 = vpop.f32.mrb[0].mxu0
        %377 = vmatprep.mubr.bf16.mxu0 0
        %378 = vmatmul.mubr.bf16.gmra.mrb[0].mxu0 %v307
        %v379 = vpop.f32.mrb[0].mxu0
        %v380 = vadd.f32 %v294, %v379
        %v381 = vpop.f32.mrb[0].mxu0
        %v382 = vpop.f32.mrb[0].mxu0
        %v383 = vadd.f32 %v294, %v382
        %v384 = vpop.f32.mrb[0].mxu0
        %385 = vmatprep.mubr.bf16.mxu0 0
        %386 = vmatmul.mubr.bf16.gmra.mrb[0].mxu0 %v310
        %v387 = vpop.f32.mrb[0].mxu0
        %v388 = vadd.f32 %v294, %v387
        %v389 = vpop.f32.mrb[0].mxu0
        %v390 = vpop.f32.mrb[0].mxu0
        %v391 = vadd.f32 %v294, %v390
        %v392 = vpop.f32.mrb[0].mxu0
        %393 = vmatprep.mubr.bf16.mxu0 0
        %394 = vmatmul.mubr.bf16.gmra.mrb[0].mxu0 %v313
        %v395 = vpop.f32.mrb[0].mxu0
        %v396 = vadd.f32 %v294, %v395
        %v397 = vpop.f32.mrb[0].mxu0
        %v398 = vpop.f32.mrb[0].mxu0
        %v399 = vadd.f32 %v294, %v398
        %v400 = vpop.f32.mrb[0].mxu0
        %401 = vmatprep.mubr.bf16.mxu0 0
        %402 = vmatmul.mubr.bf16.gmra.mrb[0].mxu0 %v316
        %v403 = vpop.f32.mrb[0].mxu0
        %v404 = vadd.f32 %v294, %v403
        %v405 = vpop.f32.mrb[0].mxu0
        %v406 = vpop.f32.mrb[0].mxu0
        %v407 = vadd.f32 %v294, %v406
        %v408 = vpop.f32.mrb[0].mxu0
        %409 = vmatprep.mubr.bf16.mxu0 0
        %410 = vmatmul.mubr.bf16.gmra.mrb[0].mxu0 %v319
        %v411 = vpop.f32.mrb[0].mxu0
        %v412 = vadd.f32 %v294, %v411
        %v413 = vpop.f32.mrb[0].mxu0
        %v414 = vpop.f32.mrb[0].mxu0
        %v415 = vadd.f32 %v294, %v414
        %v416 = vpop.f32.mrb[0].mxu0
        %417 = vdwg.mxu0
        %v418 = vld [vmem:[%s251] sm:$0xff]
        %v419 = vld [vmem:[%s251 + $0x8] sm:$0xff]
        %v420 = vld [vmem:[%s251 + $0x10] sm:$0xff]
        %v421 = vld [vmem:[%s251 + $0x18] sm:$0xff]
        %v422 = vld [vmem:[%s251 + $0x20] sm:$0xff]
        %v423 = vld [vmem:[%s251 + $0x28] sm:$0xff]
        %v424 = vld [vmem:[%s251 + $0x30] sm:$0xff]
        %v425 = vld [vmem:[%s251 + $0x38] sm:$0xff]
        %v426 = vld [vmem:[%s251 + $0x40] sm:$0xff]
        %v427 = vld [vmem:[%s251 + $0x48] sm:$0xff]
        %v428 = vld [vmem:[%s251 + $0x50] sm:$0xff]
        %v429 = vld [vmem:[%s251 + $0x58] sm:$0xff]
        %v430 = vld [vmem:[%s251 + $0x60] sm:$0xff]
        %v431 = vld [vmem:[%s251 + $0x68] sm:$0xff]
        %v432 = vld [vmem:[%s251 + $0x70] sm:$0xff]
        %v433 = vld [vmem:[%s251 + $0x78] sm:$0xff]
        %v434 = vpack.c.bf16 %v419, %v418
        %v435 = vpack.c.bf16 %v421, %v420
        %v436 = vpack.c.bf16 %v423, %v422
        %v437 = vpack.c.bf16 %v425, %v424
        %v438 = vpack.c.bf16 %v427, %v426
        %v439 = vpack.c.bf16 %v429, %v428
        %v440 = vpack.c.bf16 %v431, %v430
        %v441 = vpack.c.bf16 %v433, %v432
        %v443 = vsel %vm296, %v434, 0
        %v446 = vsel %vm296, %v435, 0
        %v449 = vsel %vm296, %v436, 0
        %v452 = vsel %vm296, %v437, 0
        %v455 = vsel %vm296, %v438, 0
        %v458 = vsel %vm296, %v439, 0
        %v461 = vsel %vm296, %v440, 0
        %v464 = vsel %vm296, %v441, 0
        %466 = vmatprep.subr.bf16.mxu0 0
        %467 = vmatpush1.bf16.msra.mxu0 %v261
        %468 = vmatprep.subr.bf16.mxu0 0
        %469 = vmatpush1.bf16.msra.mxu0 %v262
        %470 = vmatprep.subr.bf16.mxu0 0
        %471 = vmatpush1.bf16.msra.mxu0 %v263
        %472 = vmatprep.subr.bf16.mxu0 0
        %473 = vmatpush1.bf16.msra.mxu0 %v264
        %474 = vmatprep.subr.bf16.mxu0 0
        %475 = vmatpush1.bf16.msra.mxu0 0
        %476 = vmatprep.subr.bf16.mxu0 0
        %477 = vmatpush1.bf16.msra.mxu0 0
        %478 = vmatprep.subr.bf16.mxu0 0
        %479 = vmatpush1.bf16.msra.mxu0 0
        %480 = vmatprep.subr.bf16.mxu0 0
        %481 = vmatpush1.bf16.msra.mxu0 0
        %482 = vmatprep.subr.bf16.mxu0 0
        %483 = vmatpush1.bf16.msra.mxu0 0
        %484 = vmatprep.subr.bf16.mxu0 0
        %485 = vmatpush1.bf16.msra.mxu0 0
        %486 = vmatprep.subr.bf16.mxu0 0
        %487 = vmatpush1.bf16.msra.mxu0 0
        %488 = vmatprep.subr.bf16.mxu0 0
        %489 = vmatpush1.bf16.msra.mxu0 0
        %490 = vmatprep.subr.bf16.mxu0 0
        %491 = vmatpush1.bf16.msra.mxu0 0
        %492 = vmatprep.subr.bf16.mxu0 0
        %493 = vmatpush1.bf16.msra.mxu0 0
        %494 = vmatprep.subr.bf16.mxu0 0
        %495 = vmatpush1.bf16.msra.mxu0 0
        %496 = vmatprep.subr.bf16.mxu0 0
        %497 = vmatpush1.bf16.msra.mxu0 0
        %498 = vmatprep.mubr.bf16.mxu0 0
        %499 = vmatmul.mubr.bf16.gmra.mrb[0].mxu0 %v443
        %v500 = vpop.f32.mrb[0].mxu0
        %v501 = vadd.f32 %v294, %v500
        %v502 = vpop.f32.mrb[0].mxu0
        %v503 = vpop.f32.mrb[0].mxu0
        %v504 = vadd.f32 %v294, %v503
        %v505 = vpop.f32.mrb[0].mxu0
        %506 = vmatprep.mubr.bf16.mxu0 0
        %507 = vmatmul.mubr.bf16.gmra.mrb[0].mxu0 %v446
        %v508 = vpop.f32.mrb[0].mxu0
        %v509 = vadd.f32 %v294, %v508
        %v510 = vpop.f32.mrb[0].mxu0
        %v511 = vpop.f32.mrb[0].mxu0
        %v512 = vadd.f32 %v294, %v511
        %v513 = vpop.f32.mrb[0].mxu0
        %514 = vmatprep.mubr.bf16.mxu0 0
        %515 = vmatmul.mubr.bf16.gmra.mrb[0].mxu0 %v449
        %v516 = vpop.f32.mrb[0].mxu0
        %v517 = vadd.f32 %v294, %v516
        %v518 = vpop.f32.mrb[0].mxu0
        %v519 = vpop.f32.mrb[0].mxu0
        %v520 = vadd.f32 %v294, %v519
        %v521 = vpop.f32.mrb[0].mxu0
        %522 = vmatprep.mubr.bf16.mxu0 0
        %523 = vmatmul.mubr.bf16.gmra.mrb[0].mxu0 %v452
        %v524 = vpop.f32.mrb[0].mxu0
        %v525 = vadd.f32 %v294, %v524
        %v526 = vpop.f32.mrb[0].mxu0
        %v527 = vpop.f32.mrb[0].mxu0
        %v528 = vadd.f32 %v294, %v527
        %v529 = vpop.f32.mrb[0].mxu0
        %530 = vmatprep.mubr.bf16.mxu0 0
        %531 = vmatmul.mubr.bf16.gmra.mrb[0].mxu0 %v455
        %v532 = vpop.f32.mrb[0].mxu0
        %v533 = vadd.f32 %v294, %v532
        %v534 = vpop.f32.mrb[0].mxu0
        %v535 = vpop.f32.mrb[0].mxu0
        %v536 = vadd.f32 %v294, %v535
        %v537 = vpop.f32.mrb[0].mxu0
        %538 = vmatprep.mubr.bf16.mxu0 0
        %539 = vmatmul.mubr.bf16.gmra.mrb[0].mxu0 %v458
        %v540 = vpop.f32.mrb[0].mxu0
        %v541 = vadd.f32 %v294, %v540
        %v542 = vpop.f32.mrb[0].mxu0
        %v543 = vpop.f32.mrb[0].mxu0
        %v544 = vadd.f32 %v294, %v543
        %v545 = vpop.f32.mrb[0].mxu0
        %546 = vmatprep.mubr.bf16.mxu0 0
        %547 = vmatmul.mubr.bf16.gmra.mrb[0].mxu0 %v461
        %v548 = vpop.f32.mrb[0].mxu0
        %v549 = vadd.f32 %v294, %v548
        %v550 = vpop.f32.mrb[0].mxu0
        %v551 = vpop.f32.mrb[0].mxu0
        %v552 = vadd.f32 %v294, %v551
        %v553 = vpop.f32.mrb[0].mxu0
        %554 = vmatprep.mubr.bf16.mxu0 0
        %555 = vmatmul.mubr.bf16.gmra.mrb[0].mxu0 %v464
        %v556 = vpop.f32.mrb[0].mxu0
        %v557 = vadd.f32 %v294, %v556
        %v558 = vpop.f32.mrb[0].mxu0
        %v559 = vpop.f32.mrb[0].mxu0
        %v560 = vadd.f32 %v294, %v559
        %v561 = vpop.f32.mrb[0].mxu0
        %562 = vdwg.mxu0
        %v563 = vmul.f32 %v356, 0.17677669
        %v564 = vmul.f32 %v359, 0.17677669
        %v565 = vmul.f32 %v364, 0.17677669
        %v566 = vmul.f32 %v367, 0.17677669
        %v567 = vmul.f32 %v372, 0.17677669
        %v568 = vmul.f32 %v375, 0.17677669
        %v569 = vmul.f32 %v380, 0.17677669
        %v570 = vmul.f32 %v383, 0.17677669
        %v571 = vmul.f32 %v388, 0.17677669
        %v572 = vmul.f32 %v391, 0.17677669
        %v573 = vmul.f32 %v396, 0.17677669
        %v574 = vmul.f32 %v399, 0.17677669
        %v575 = vmul.f32 %v404, 0.17677669
        %v576 = vmul.f32 %v407, 0.17677669
        %v577 = vmul.f32 %v412, 0.17677669
        %v578 = vmul.f32 %v415, 0.17677669
        %v579 = vpack.c.bf16 %v564, %v563
        %v580 = vpack.c.bf16 %v566, %v565
        %v581 = vpack.c.bf16 %v568, %v567
        %v582 = vpack.c.bf16 %v570, %v569
        %v583 = vpack.c.bf16 %v572, %v571
        %v584 = vpack.c.bf16 %v574, %v573
        %v585 = vpack.c.bf16 %v576, %v575
        %v586 = vpack.c.bf16 %v578, %v577
        %v587 = vpack.c.bf16 %v504, %v501
        %v588 = vpack.c.bf16 %v512, %v509
        %v589 = vpack.c.bf16 %v520, %v517
        %v590 = vpack.c.bf16 %v528, %v525
        %v591 = vpack.c.bf16 %v536, %v533
        %v592 = vpack.c.bf16 %v544, %v541
        %v593 = vpack.c.bf16 %v552, %v549
        %v594 = vpack.c.bf16 %v560, %v557
        %vm595 = vcmask 261120
        %v597 = vsel %vm595, %v579, 0
        %v600 = vsel %vm595, %v580, 0
        %v603 = vsel %vm595, %v581, 0
        %v606 = vsel %vm595, %v582, 0
        %v609 = vsel %vm595, %v583, 0
        %v612 = vsel %vm595, %v584, 0
        %v615 = vsel %vm595, %v585, 0
        %v618 = vsel %vm595, %v586, 0
        %v621 = vsel %vm595, %v587, 0
        %v624 = vsel %vm595, %v588, 0
        %v627 = vsel %vm595, %v589, 0
        %v630 = vsel %vm595, %v590, 0
        %v633 = vsel %vm595, %v591, 0
        %v636 = vsel %vm595, %v592, 0
        %v639 = vsel %vm595, %v593, 0
        %v642 = vsel %vm595, %v594, 0
        %644 = vmatprep.subr.bf16.mxu0 0
        %645 = vmatpush1.bf16.xpose.msra.mxu0 %v621
        %646 = vmatprep.subr.bf16.mxu0 0
        %647 = vmatpush1.bf16.xpose.msra.mxu0 %v624
        %648 = vmatprep.subr.bf16.mxu0 0
        %649 = vmatpush1.bf16.xpose.msra.mxu0 %v627
        %650 = vmatprep.subr.bf16.mxu0 0
        %651 = vmatpush1.bf16.xpose.msra.mxu0 %v630
        %652 = vmatprep.subr.bf16.mxu0 0
        %653 = vmatpush1.bf16.xpose.msra.mxu0 %v633
        %654 = vmatprep.subr.bf16.mxu0 0
        %655 = vmatpush1.bf16.xpose.msra.mxu0 %v636
        %656 = vmatprep.subr.bf16.mxu0 0
        %657 = vmatpush1.bf16.xpose.msra.mxu0 %v639
        %658 = vmatprep.subr.bf16.mxu0 0
        %659 = vmatpush1.bf16.xpose.msra.mxu0 %v642
        %660 = vmatprep.subr.bf16.mxu0 0
        %661 = vmatpush1.bf16.xpose.msra.mxu0 0
        %662 = vmatprep.subr.bf16.mxu0 0
        %663 = vmatpush1.bf16.xpose.msra.mxu0 0
        %664 = vmatprep.subr.bf16.mxu0 0
        %665 = vmatpush1.bf16.xpose.msra.mxu0 0
        %666 = vmatprep.subr.bf16.mxu0 0
        %667 = vmatpush1.bf16.xpose.msra.mxu0 0
        %668 = vmatprep.subr.bf16.mxu0 0
        %669 = vmatpush1.bf16.xpose.msra.mxu0 0
        %670 = vmatprep.subr.bf16.mxu0 0
        %671 = vmatpush1.bf16.xpose.msra.mxu0 0
        %672 = vmatprep.subr.bf16.mxu0 0
        %673 = vmatpush1.bf16.xpose.msra.mxu0 0
        %674 = vmatprep.subr.bf16.mxu0 0
        %675 = vmatpush1.bf16.xpose.msra.mxu0 0
        %676 = vmatprep.mubr.bf16.mxu0 0
        %677 = vmatmul.mubr.bf16.gmra.mrb[0].mxu0 %v597
        %v678 = vpop.f32.mrb[0].mxu0
        %v679 = vadd.f32 0.0, %v678
        %v680 = vpop.f32.mrb[0].mxu0
        %v681 = vpop.f32.mrb[0].mxu0
        %v682 = vadd.f32 0.0, %v681
        %v683 = vpop.f32.mrb[0].mxu0
        %684 = vmatprep.mubr.bf16.mxu0 0
        %685 = vmatmul.mubr.bf16.gmra.mrb[0].mxu0 %v600
        %v686 = vpop.f32.mrb[0].mxu0
        %v687 = vadd.f32 0.0, %v686
        %v688 = vpop.f32.mrb[0].mxu0
        %v689 = vpop.f32.mrb[0].mxu0
        %v690 = vadd.f32 0.0, %v689
        %v691 = vpop.f32.mrb[0].mxu0
        %692 = vmatprep.mubr.bf16.mxu0 0
        %693 = vmatmul.mubr.bf16.gmra.mrb[0].mxu0 %v603
        %v694 = vpop.f32.mrb[0].mxu0
        %v695 = vadd.f32 0.0, %v694
        %v696 = vpop.f32.mrb[0].mxu0
        %v697 = vpop.f32.mrb[0].mxu0
        %v698 = vadd.f32 0.0, %v697
        %v699 = vpop.f32.mrb[0].mxu0
        %700 = vmatprep.mubr.bf16.mxu0 0
        %701 = vmatmul.mubr.bf16.gmra.mrb[0].mxu0 %v606
        %v702 = vpop.f32.mrb[0].mxu0
        %v703 = vadd.f32 0.0, %v702
        %v704 = vpop.f32.mrb[0].mxu0
        %v705 = vpop.f32.mrb[0].mxu0
        %v706 = vadd.f32 0.0, %v705
        %v707 = vpop.f32.mrb[0].mxu0
        %708 = vmatprep.mubr.bf16.mxu0 0
        %709 = vmatmul.mubr.bf16.gmra.mrb[0].mxu0 %v609
        %v710 = vpop.f32.mrb[0].mxu0
        %v711 = vadd.f32 0.0, %v710
        %v712 = vpop.f32.mrb[0].mxu0
        %v713 = vpop.f32.mrb[0].mxu0
        %v714 = vadd.f32 0.0, %v713
        %v715 = vpop.f32.mrb[0].mxu0
        %716 = vmatprep.mubr.bf16.mxu0 0
        %717 = vmatmul.mubr.bf16.gmra.mrb[0].mxu0 %v612
        %v718 = vpop.f32.mrb[0].mxu0
        %v719 = vadd.f32 0.0, %v718
        %v720 = vpop.f32.mrb[0].mxu0
        %v721 = vpop.f32.mrb[0].mxu0
        %v722 = vadd.f32 0.0, %v721
        %v723 = vpop.f32.mrb[0].mxu0
        %724 = vmatprep.mubr.bf16.mxu0 0
        %725 = vmatmul.mubr.bf16.gmra.mrb[0].mxu0 %v615
        %v726 = vpop.f32.mrb[0].mxu0
        %v727 = vadd.f32 0.0, %v726
        %v728 = vpop.f32.mrb[0].mxu0
        %v729 = vpop.f32.mrb[0].mxu0
        %v730 = vadd.f32 0.0, %v729
        %v731 = vpop.f32.mrb[0].mxu0
        %732 = vmatprep.mubr.bf16.mxu0 0
        %733 = vmatmul.mubr.bf16.gmra.mrb[0].mxu0 %v618
        %v734 = vpop.f32.mrb[0].mxu0
        %v735 = vadd.f32 0.0, %v734
        %v736 = vpop.f32.mrb[0].mxu0
        %v737 = vpop.f32.mrb[0].mxu0
        %v738 = vadd.f32 0.0, %v737
        %v739 = vpop.f32.mrb[0].mxu0
        %740 = vdwg.mxu0
        %741 = vmax.xlane.f32.xlu0 %v679
        %v742 = vpop.xlane.xlu0 %741
        %743 = vmax.xlane.f32.xlu0 %v682
        %v744 = vpop.xlane.xlu0 %743
        %745 = vmax.xlane.f32.xlu0 %v687
        %v746 = vpop.xlane.xlu0 %745
        %747 = vmax.xlane.f32.xlu0 %v690
        %v748 = vpop.xlane.xlu0 %747
        %749 = vmax.xlane.f32.xlu0 %v695
        %v750 = vpop.xlane.xlu0 %749
        %751 = vmax.xlane.f32.xlu0 %v698
        %v752 = vpop.xlane.xlu0 %751
        %753 = vmax.xlane.f32.xlu0 %v703
        %v754 = vpop.xlane.xlu0 %753
        %755 = vmax.xlane.f32.xlu0 %v706
        %v756 = vpop.xlane.xlu0 %755
        %757 = vmax.xlane.f32.xlu0 %v711
        %v758 = vpop.xlane.xlu0 %757
        %759 = vmax.xlane.f32.xlu0 %v714
        %v760 = vpop.xlane.xlu0 %759
        %761 = vmax.xlane.f32.xlu0 %v719
        %v762 = vpop.xlane.xlu0 %761
        %763 = vmax.xlane.f32.xlu0 %v722
        %v764 = vpop.xlane.xlu0 %763
        %765 = vmax.xlane.f32.xlu0 %v727
        %v766 = vpop.xlane.xlu0 %765
        %767 = vmax.xlane.f32.xlu0 %v730
        %v768 = vpop.xlane.xlu0 %767
        %769 = vmax.xlane.f32.xlu0 %v735
        %v770 = vpop.xlane.xlu0 %769
        %771 = vmax.xlane.f32.xlu0 %v738
        %v772 = vpop.xlane.xlu0 %771
        %v773 = vlaneseq
        %v774 = vand.u32 %v773, 127
        %vm775 = vcmp.eq.f32.partialorder %v679, %v742
        %vm776 = vcmp.eq.f32.partialorder %v682, %v744
        %vm777 = vcmp.eq.f32.partialorder %v687, %v746
        %vm778 = vcmp.eq.f32.partialorder %v690, %v748
        %vm779 = vcmp.eq.f32.partialorder %v695, %v750
        %vm780 = vcmp.eq.f32.partialorder %v698, %v752
        %vm781 = vcmp.eq.f32.partialorder %v703, %v754
        %vm782 = vcmp.eq.f32.partialorder %v706, %v756
        %vm783 = vcmp.eq.f32.partialorder %v711, %v758
        %vm784 = vcmp.eq.f32.partialorder %v714, %v760
        %vm785 = vcmp.eq.f32.partialorder %v719, %v762
        %vm786 = vcmp.eq.f32.partialorder %v722, %v764
        %vm787 = vcmp.eq.f32.partialorder %v727, %v766
        %vm788 = vcmp.eq.f32.partialorder %v730, %v768
        %vm789 = vcmp.eq.f32.partialorder %v735, %v770
        %vm790 = vcmp.eq.f32.partialorder %v738, %v772
        %v791 = vsel %vm775, %v774, 2147483647
        %v792 = vsel %vm776, %v774, 2147483647
        %v793 = vsel %vm777, %v774, 2147483647
        %v794 = vsel %vm778, %v774, 2147483647
        %v795 = vsel %vm779, %v774, 2147483647
        %v796 = vsel %vm780, %v774, 2147483647
        %v797 = vsel %vm781, %v774, 2147483647
        %v798 = vsel %vm782, %v774, 2147483647
        %v799 = vsel %vm783, %v774, 2147483647
        %v800 = vsel %vm784, %v774, 2147483647
        %v801 = vsel %vm785, %v774, 2147483647
        %v802 = vsel %vm786, %v774, 2147483647
        %v803 = vsel %vm787, %v774, 2147483647
        %v804 = vsel %vm788, %v774, 2147483647
        %v805 = vsel %vm789, %v774, 2147483647
        %v806 = vsel %vm790, %v774, 2147483647
        %v807 = vand.u32 %v791, 65535
        %v808 = vshra.s32 %v791, 16
        %v809 = vcvt.s32.f32 %v807
        %v810 = vcvt.s32.f32 %v808
        %811 = vmin.xlane.f32.xlu0 %v810
        %v812 = vpop.xlane.xlu0 %811
        %vm813 = vcmp.eq.f32.partialorder %v810, %v812
        %v814 = vsel %vm813, %v809, inf
        %815 = vmin.xlane.f32.xlu0 %v814
        %v816 = vpop.xlane.xlu0 %815
        %v817 = vcvt.f32.s32 %v816
        %v818 = vcvt.f32.s32 %v812
        %v819 = vshll.u32 %v818, 16
        %v820 = vadd.s32 %v819, %v817
        %v821 = vand.u32 %v792, 65535
        %v822 = vshra.s32 %v792, 16
        %v823 = vcvt.s32.f32 %v821
        %v824 = vcvt.s32.f32 %v822
        %825 = vmin.xlane.f32.xlu0 %v824
        %v826 = vpop.xlane.xlu0 %825
        %vm827 = vcmp.eq.f32.partialorder %v824, %v826
        %v828 = vsel %vm827, %v823, inf
        %829 = vmin.xlane.f32.xlu0 %v828
        %v830 = vpop.xlane.xlu0 %829
        %v831 = vcvt.f32.s32 %v830
        %v832 = vcvt.f32.s32 %v826
        %v833 = vshll.u32 %v832, 16
        %v834 = vadd.s32 %v833, %v831
        %v835 = vand.u32 %v793, 65535
        %v836 = vshra.s32 %v793, 16
        %v837 = vcvt.s32.f32 %v835
        %v838 = vcvt.s32.f32 %v836
        %839 = vmin.xlane.f32.xlu0 %v838
        %v840 = vpop.xlane.xlu0 %839
        %vm841 = vcmp.eq.f32.partialorder %v838, %v840
        %v842 = vsel %vm841, %v837, inf
        %843 = vmin.xlane.f32.xlu0 %v842
        %v844 = vpop.xlane.xlu0 %843
        %v845 = vcvt.f32.s32 %v844
        %v846 = vcvt.f32.s32 %v840
        %v847 = vshll.u32 %v846, 16
        %v848 = vadd.s32 %v847, %v845
        %v849 = vand.u32 %v794, 65535
        %v850 = vshra.s32 %v794, 16
        %v851 = vcvt.s32.f32 %v849
        %v852 = vcvt.s32.f32 %v850
        %853 = vmin.xlane.f32.xlu0 %v852
        %v854 = vpop.xlane.xlu0 %853
        %vm855 = vcmp.eq.f32.partialorder %v852, %v854
        %v856 = vsel %vm855, %v851, inf
        %857 = vmin.xlane.f32.xlu0 %v856
        %v858 = vpop.xlane.xlu0 %857
        %v859 = vcvt.f32.s32 %v858
        %v860 = vcvt.f32.s32 %v854
        %v861 = vshll.u32 %v860, 16
        %v862 = vadd.s32 %v861, %v859
        %v863 = vand.u32 %v795, 65535
        %v864 = vshra.s32 %v795, 16
        %v865 = vcvt.s32.f32 %v863
        %v866 = vcvt.s32.f32 %v864
        %867 = vmin.xlane.f32.xlu0 %v866
        %v868 = vpop.xlane.xlu0 %867
        %vm869 = vcmp.eq.f32.partialorder %v866, %v868
        %v870 = vsel %vm869, %v865, inf
        %871 = vmin.xlane.f32.xlu0 %v870
        %v872 = vpop.xlane.xlu0 %871
        %v873 = vcvt.f32.s32 %v872
        %v874 = vcvt.f32.s32 %v868
        %v875 = vshll.u32 %v874, 16
        %v876 = vadd.s32 %v875, %v873
        %v877 = vand.u32 %v796, 65535
        %v878 = vshra.s32 %v796, 16
        %v879 = vcvt.s32.f32 %v877
        %v880 = vcvt.s32.f32 %v878
        %881 = vmin.xlane.f32.xlu0 %v880
        %v882 = vpop.xlane.xlu0 %881
        %vm883 = vcmp.eq.f32.partialorder %v880, %v882
        %v884 = vsel %vm883, %v879, inf
        %885 = vmin.xlane.f32.xlu0 %v884
        %v886 = vpop.xlane.xlu0 %885
        %v887 = vcvt.f32.s32 %v886
        %v888 = vcvt.f32.s32 %v882
        %v889 = vshll.u32 %v888, 16
        %v890 = vadd.s32 %v889, %v887
        %v891 = vand.u32 %v797, 65535
        %v892 = vshra.s32 %v797, 16
        %v893 = vcvt.s32.f32 %v891
        %v894 = vcvt.s32.f32 %v892
        %895 = vmin.xlane.f32.xlu0 %v894
        %v896 = vpop.xlane.xlu0 %895
        %vm897 = vcmp.eq.f32.partialorder %v894, %v896
        %v898 = vsel %vm897, %v893, inf
        %899 = vmin.xlane.f32.xlu0 %v898
        %v900 = vpop.xlane.xlu0 %899
        %v901 = vcvt.f32.s32 %v900
        %v902 = vcvt.f32.s32 %v896
        %v903 = vshll.u32 %v902, 16
        %v904 = vadd.s32 %v903, %v901
        %v905 = vand.u32 %v798, 65535
        %v906 = vshra.s32 %v798, 16
        %v907 = vcvt.s32.f32 %v905
        %v908 = vcvt.s32.f32 %v906
        %909 = vmin.xlane.f32.xlu0 %v908
        %v910 = vpop.xlane.xlu0 %909
        %vm911 = vcmp.eq.f32.partialorder %v908, %v910
        %v912 = vsel %vm911, %v907, inf
        %913 = vmin.xlane.f32.xlu0 %v912
        %v914 = vpop.xlane.xlu0 %913
        %v915 = vcvt.f32.s32 %v914
        %v916 = vcvt.f32.s32 %v910
        %v917 = vshll.u32 %v916, 16
        %v918 = vadd.s32 %v917, %v915
        %v919 = vand.u32 %v799, 65535
        %v920 = vshra.s32 %v799, 16
        %v921 = vcvt.s32.f32 %v919
        %v922 = vcvt.s32.f32 %v920
        %923 = vmin.xlane.f32.xlu0 %v922
        %v924 = vpop.xlane.xlu0 %923
        %vm925 = vcmp.eq.f32.partialorder %v922, %v924
        %v926 = vsel %vm925, %v921, inf
        %927 = vmin.xlane.f32.xlu0 %v926
        %v928 = vpop.xlane.xlu0 %927
        %v929 = vcvt.f32.s32 %v928
        %v930 = vcvt.f32.s32 %v924
        %v931 = vshll.u32 %v930, 16
        %v932 = vadd.s32 %v931, %v929
        %v933 = vand.u32 %v800, 65535
        %v934 = vshra.s32 %v800, 16
        %v935 = vcvt.s32.f32 %v933
        %v936 = vcvt.s32.f32 %v934
        %937 = vmin.xlane.f32.xlu0 %v936
        %v938 = vpop.xlane.xlu0 %937
        %vm939 = vcmp.eq.f32.partialorder %v936, %v938
        %v940 = vsel %vm939, %v935, inf
        %941 = vmin.xlane.f32.xlu0 %v940
        %v942 = vpop.xlane.xlu0 %941
        %v943 = vcvt.f32.s32 %v942
        %v944 = vcvt.f32.s32 %v938
        %v945 = vshll.u32 %v944, 16
        %v946 = vadd.s32 %v945, %v943
        %v947 = vand.u32 %v801, 65535
        %v948 = vshra.s32 %v801, 16
        %v949 = vcvt.s32.f32 %v947
        %v950 = vcvt.s32.f32 %v948
        %951 = vmin.xlane.f32.xlu0 %v950
        %v952 = vpop.xlane.xlu0 %951
        %vm953 = vcmp.eq.f32.partialorder %v950, %v952
        %v954 = vsel %vm953, %v949, inf
        %955 = vmin.xlane.f32.xlu0 %v954
        %v956 = vpop.xlane.xlu0 %955
        %v957 = vcvt.f32.s32 %v956
        %v958 = vcvt.f32.s32 %v952
        %v959 = vshll.u32 %v958, 16
        %v960 = vadd.s32 %v959, %v957
        %v961 = vand.u32 %v802, 65535
        %v962 = vshra.s32 %v802, 16
        %v963 = vcvt.s32.f32 %v961
        %v964 = vcvt.s32.f32 %v962
        %965 = vmin.xlane.f32.xlu0 %v964
        %v966 = vpop.xlane.xlu0 %965
        %vm967 = vcmp.eq.f32.partialorder %v964, %v966
        %v968 = vsel %vm967, %v963, inf
        %969 = vmin.xlane.f32.xlu0 %v968
        %v970 = vpop.xlane.xlu0 %969
        %v971 = vcvt.f32.s32 %v970
        %v972 = vcvt.f32.s32 %v966
        %v973 = vshll.u32 %v972, 16
        %v974 = vadd.s32 %v973, %v971
        %v975 = vand.u32 %v803, 65535
        %v976 = vshra.s32 %v803, 16
        %v977 = vcvt.s32.f32 %v975
        %v978 = vcvt.s32.f32 %v976
        %979 = vmin.xlane.f32.xlu0 %v978
        %v980 = vpop.xlane.xlu0 %979
        %vm981 = vcmp.eq.f32.partialorder %v978, %v980
        %v982 = vsel %vm981, %v977, inf
        %983 = vmin.xlane.f32.xlu0 %v982
        %v984 = vpop.xlane.xlu0 %983
        %v985 = vcvt.f32.s32 %v984
        %v986 = vcvt.f32.s32 %v980
        %v987 = vshll.u32 %v986, 16
        %v988 = vadd.s32 %v987, %v985
        %v989 = vand.u32 %v804, 65535
        %v990 = vshra.s32 %v804, 16
        %v991 = vcvt.s32.f32 %v989
        %v992 = vcvt.s32.f32 %v990
        %993 = vmin.xlane.f32.xlu0 %v992
        %v994 = vpop.xlane.xlu0 %993
        %vm995 = vcmp.eq.f32.partialorder %v992, %v994
        %v996 = vsel %vm995, %v991, inf
        %997 = vmin.xlane.f32.xlu0 %v996
        %v998 = vpop.xlane.xlu0 %997
        %v999 = vcvt.f32.s32 %v998
        %v1000 = vcvt.f32.s32 %v994
        %v1001 = vshll.u32 %v1000, 16
        %v1002 = vadd.s32 %v1001, %v999
        %v1003 = vand.u32 %v805, 65535
        %v1004 = vshra.s32 %v805, 16
        %v1005 = vcvt.s32.f32 %v1003
        %v1006 = vcvt.s32.f32 %v1004
        %1007 = vmin.xlane.f32.xlu0 %v1006
        %v1008 = vpop.xlane.xlu0 %1007
        %vm1009 = vcmp.eq.f32.partialorder %v1006, %v1008
        %v1010 = vsel %vm1009, %v1005, inf
        %1011 = vmin.xlane.f32.xlu0 %v1010
        %v1012 = vpop.xlane.xlu0 %1011
        %v1013 = vcvt.f32.s32 %v1012
        %v1014 = vcvt.f32.s32 %v1008
        %v1015 = vshll.u32 %v1014, 16
        %v1016 = vadd.s32 %v1015, %v1013
        %v1017 = vand.u32 %v806, 65535
        %v1018 = vshra.s32 %v806, 16
        %v1019 = vcvt.s32.f32 %v1017
        %v1020 = vcvt.s32.f32 %v1018
        %1021 = vmin.xlane.f32.xlu0 %v1020
        %v1022 = vpop.xlane.xlu0 %1021
        %vm1023 = vcmp.eq.f32.partialorder %v1020, %v1022
        %v1024 = vsel %vm1023, %v1019, inf
        %1025 = vmin.xlane.f32.xlu0 %v1024
        %v1026 = vpop.xlane.xlu0 %1025
        %v1027 = vcvt.f32.s32 %v1026
        %v1028 = vcvt.f32.s32 %v1022
        %v1029 = vshll.u32 %v1028, 16
        %v1030 = vadd.s32 %v1029, %v1027
        %v1031 = vsub.f32 %v679, %v742
        %v1032 = vsub.f32 %v682, %v744
        %v1033 = vsub.f32 %v687, %v746
        %v1034 = vsub.f32 %v690, %v748
        %v1035 = vsub.f32 %v695, %v750
        %v1036 = vsub.f32 %v698, %v752
        %v1037 = vsub.f32 %v703, %v754
        %v1038 = vsub.f32 %v706, %v756
        %v1039 = vsub.f32 %v711, %v758
        %v1040 = vsub.f32 %v714, %v760
        %v1041 = vsub.f32 %v719, %v762
        %v1042 = vsub.f32 %v722, %v764
        %v1043 = vsub.f32 %v727, %v766
        %v1044 = vsub.f32 %v730, %v768
        %v1045 = vsub.f32 %v735, %v770
        %v1046 = vsub.f32 %v738, %v772
        %v1047 = vmul.f32 %v1031, 1.442695
        %v1048 = vpow.pop %v1047
        %v1049 = vmul.f32 %v1032, 1.442695
        %v1050 = vpow.pop %v1049
        %v1051 = vmul.f32 %v1033, 1.442695
        %v1052 = vpow.pop %v1051
        %v1053 = vmul.f32 %v1034, 1.442695
        %v1054 = vpow.pop %v1053
        %v1055 = vmul.f32 %v1035, 1.442695
        %v1056 = vpow.pop %v1055
        %v1057 = vmul.f32 %v1036, 1.442695
        %v1058 = vpow.pop %v1057
        %v1059 = vmul.f32 %v1037, 1.442695
        %v1060 = vpow.pop %v1059
        %v1061 = vmul.f32 %v1038, 1.442695
        %v1062 = vpow.pop %v1061
        %v1063 = vmul.f32 %v1039, 1.442695
        %v1064 = vpow.pop %v1063
        %v1065 = vmul.f32 %v1040, 1.442695
        %v1066 = vpow.pop %v1065
        %v1067 = vmul.f32 %v1041, 1.442695
        %v1068 = vpow.pop %v1067
        %v1069 = vmul.f32 %v1042, 1.442695
        %v1070 = vpow.pop %v1069
        %v1071 = vmul.f32 %v1043, 1.442695
        %v1072 = vpow.pop %v1071
        %v1073 = vmul.f32 %v1044, 1.442695
        %v1074 = vpow.pop %v1073
        %v1075 = vmul.f32 %v1045, 1.442695
        %v1076 = vpow.pop %v1075
        %v1077 = vmul.f32 %v1046, 1.442695
        %v1078 = vpow.pop %v1077
        %1079 = vadd.xlane.f32.xlu0 %v1048
        %v1080 = vpop.xlane.xlu0 %1079
        %1081 = vadd.xlane.f32.xlu0 %v1050
        %v1082 = vpop.xlane.xlu0 %1081
        %1083 = vadd.xlane.f32.xlu0 %v1052
        %v1084 = vpop.xlane.xlu0 %1083
        %1085 = vadd.xlane.f32.xlu0 %v1054
        %v1086 = vpop.xlane.xlu0 %1085
        %1087 = vadd.xlane.f32.xlu0 %v1056
        %v1088 = vpop.xlane.xlu0 %1087
        %1089 = vadd.xlane.f32.xlu0 %v1058
        %v1090 = vpop.xlane.xlu0 %1089
        %1091 = vadd.xlane.f32.xlu0 %v1060
        %v1092 = vpop.xlane.xlu0 %1091
        %1093 = vadd.xlane.f32.xlu0 %v1062
        %v1094 = vpop.xlane.xlu0 %1093
        %1095 = vadd.xlane.f32.xlu0 %v1064
        %v1096 = vpop.xlane.xlu0 %1095
        %1097 = vadd.xlane.f32.xlu0 %v1066
        %v1098 = vpop.xlane.xlu0 %1097
        %1099 = vadd.xlane.f32.xlu0 %v1068
        %v1100 = vpop.xlane.xlu0 %1099
        %1101 = vadd.xlane.f32.xlu0 %v1070
        %v1102 = vpop.xlane.xlu0 %1101
        %1103 = vadd.xlane.f32.xlu0 %v1072
        %v1104 = vpop.xlane.xlu0 %1103
        %1105 = vadd.xlane.f32.xlu0 %v1074
        %v1106 = vpop.xlane.xlu0 %1105
        %1107 = vadd.xlane.f32.xlu0 %v1076
        %v1108 = vpop.xlane.xlu0 %1107
        %1109 = vadd.xlane.f32.xlu0 %v1078
        %v1110 = vpop.xlane.xlu0 %1109
        %v1111 = vrcp.pop %v1080
        %v1112 = vrcp.pop %v1082
        %v1113 = vrcp.pop %v1084
        %v1114 = vrcp.pop %v1086
        %v1115 = vrcp.pop %v1088
        %v1116 = vrcp.pop %v1090
        %v1117 = vrcp.pop %v1092
        %v1118 = vrcp.pop %v1094
        %v1119 = vrcp.pop %v1096
        %v1120 = vrcp.pop %v1098
        %v1121 = vrcp.pop %v1100
        %v1122 = vrcp.pop %v1102
        %v1123 = vrcp.pop %v1104
        %v1124 = vrcp.pop %v1106
        %v1125 = vrcp.pop %v1108
        %v1126 = vrcp.pop %v1110
        %v1143 = vlaneseq
        %v1144 = vshrl.u32 %v1143, 7
        %v1145 = vsub.s32 %v774, %v1144
        %v1146 = vrot.slane %v1111, %v1145
        %v1147 = vadd.s32 %v774, 4294967288
        %v1148 = vlaneseq
        %v1149 = vshrl.u32 %v1148, 7
        %v1150 = vsub.s32 %v1147, %v1149
        %v1151 = vrot.slane %v1112, %v1150
        %vm1152 = vcmask 130112
        %v1153 = vsel %vm1152, %v1151, %v1146
        %v1154 = vadd.s32 %v774, 4294967280
        %v1155 = vlaneseq
        %v1156 = vshrl.u32 %v1155, 7
        %v1157 = vsub.s32 %v1154, %v1156
        %v1158 = vrot.slane %v1113, %v1157
        %vm1159 = vcmask 195712
        %v1160 = vsel %vm1159, %v1158, %v1153
        %v1161 = vadd.s32 %v774, 4294967272
        %v1162 = vlaneseq
        %v1163 = vshrl.u32 %v1162, 7
        %v1164 = vsub.s32 %v1161, %v1163
        %v1165 = vrot.slane %v1114, %v1164
        %vm1166 = vcmask 261312
        %v1167 = vsel %vm1166, %v1165, %v1160
        %v1168 = vadd.s32 %v774, 4294967264
        %v1169 = vlaneseq
        %v1170 = vshrl.u32 %v1169, 7
        %v1171 = vsub.s32 %v1168, %v1170
        %v1172 = vrot.slane %v1115, %v1171
        %vm1173 = vcmask 326912
        %v1174 = vsel %vm1173, %v1172, %v1167
        %v1175 = vadd.s32 %v774, 4294967256
        %v1176 = vlaneseq
        %v1177 = vshrl.u32 %v1176, 7
        %v1178 = vsub.s32 %v1175, %v1177
        %v1179 = vrot.slane %v1116, %v1178
        %vm1180 = vcmask 392512
        %v1181 = vsel %vm1180, %v1179, %v1174
        %v1182 = vadd.s32 %v774, 4294967248
        %v1183 = vlaneseq
        %v1184 = vshrl.u32 %v1183, 7
        %v1185 = vsub.s32 %v1182, %v1184
        %v1186 = vrot.slane %v1117, %v1185
        %vm1187 = vcmask 458112
        %v1188 = vsel %vm1187, %v1186, %v1181
        %v1189 = vadd.s32 %v774, 4294967240
        %v1190 = vlaneseq
        %v1191 = vshrl.u32 %v1190, 7
        %v1192 = vsub.s32 %v1189, %v1191
        %v1193 = vrot.slane %v1118, %v1192
        %vm1194 = vcmask 523712
        %v1195 = vsel %vm1194, %v1193, %v1188
        %v1196 = vadd.s32 %v774, 4294967232
        %v1197 = vlaneseq
        %v1198 = vshrl.u32 %v1197, 7
        %v1199 = vsub.s32 %v1196, %v1198
        %v1200 = vrot.slane %v1119, %v1199
        %vm1201 = vcmask 589312
        %v1202 = vsel %vm1201, %v1200, %v1195
        %v1203 = vadd.s32 %v774, 4294967224
        %v1204 = vlaneseq
        %v1205 = vshrl.u32 %v1204, 7
        %v1206 = vsub.s32 %v1203, %v1205
        %v1207 = vrot.slane %v1120, %v1206
        %vm1208 = vcmask 654912
        %v1209 = vsel %vm1208, %v1207, %v1202
        %v1210 = vadd.s32 %v774, 4294967216
        %v1211 = vlaneseq
        %v1212 = vshrl.u32 %v1211, 7
        %v1213 = vsub.s32 %v1210, %v1212
        %v1214 = vrot.slane %v1121, %v1213
        %vm1215 = vcmask 720512
        %v1216 = vsel %vm1215, %v1214, %v1209
        %v1217 = vadd.s32 %v774, 4294967208
        %v1218 = vlaneseq
        %v1219 = vshrl.u32 %v1218, 7
        %v1220 = vsub.s32 %v1217, %v1219
        %v1221 = vrot.slane %v1122, %v1220
        %vm1222 = vcmask 786112
        %v1223 = vsel %vm1222, %v1221, %v1216
        %v1224 = vadd.s32 %v774, 4294967200
        %v1225 = vlaneseq
        %v1226 = vshrl.u32 %v1225, 7
        %v1227 = vsub.s32 %v1224, %v1226
        %v1228 = vrot.slane %v1123, %v1227
        %vm1229 = vcmask 851712
        %v1230 = vsel %vm1229, %v1228, %v1223
        %v1231 = vadd.s32 %v774, 4294967192
        %v1232 = vlaneseq
        %v1233 = vshrl.u32 %v1232, 7
        %v1234 = vsub.s32 %v1231, %v1233
        %v1235 = vrot.slane %v1124, %v1234
        %vm1236 = vcmask 917312
        %v1237 = vsel %vm1236, %v1235, %v1230
        %v1238 = vadd.s32 %v774, 4294967184
        %v1239 = vlaneseq
        %v1240 = vshrl.u32 %v1239, 7
        %v1241 = vsub.s32 %v1238, %v1240
        %v1242 = vrot.slane %v1125, %v1241
        %vm1243 = vcmask 982912
        %v1244 = vsel %vm1243, %v1242, %v1237
        %v1245 = vadd.s32 %v774, 4294967176
        %v1246 = vlaneseq
        %v1247 = vshrl.u32 %v1246, 7
        %v1248 = vsub.s32 %v1245, %v1247
        %v1249 = vrot.slane %v1126, %v1248
        %vm1250 = vcmask 1048512
        %v1251 = vsel %vm1250, %v1249, %v1244
        %1253 = vst [vmem:[%s235] sm:$0x1] %v1251
        %v1254 = vlaneseq
        %v1255 = vshrl.u32 %v1254, 7
        %v1256 = vsub.s32 %v774, %v1255
        %v1257 = vrot.slane %v820, %v1256
        %v1258 = vlaneseq
        %v1259 = vshrl.u32 %v1258, 7
        %v1260 = vsub.s32 %v1147, %v1259
        %v1261 = vrot.slane %v834, %v1260
        %v1262 = vsel %vm1152, %v1261, %v1257
        %v1263 = vlaneseq
        %v1264 = vshrl.u32 %v1263, 7
        %v1265 = vsub.s32 %v1154, %v1264
        %v1266 = vrot.slane %v848, %v1265
        %v1267 = vsel %vm1159, %v1266, %v1262
        %v1268 = vlaneseq
        %v1269 = vshrl.u32 %v1268, 7
        %v1270 = vsub.s32 %v1161, %v1269
        %v1271 = vrot.slane %v862, %v1270
        %v1272 = vsel %vm1166, %v1271, %v1267
        %v1273 = vlaneseq
        %v1274 = vshrl.u32 %v1273, 7
        %v1275 = vsub.s32 %v1168, %v1274
        %v1276 = vrot.slane %v876, %v1275
        %v1277 = vsel %vm1173, %v1276, %v1272
        %v1278 = vlaneseq
        %v1279 = vshrl.u32 %v1278, 7
        %v1280 = vsub.s32 %v1175, %v1279
        %v1281 = vrot.slane %v890, %v1280
        %v1282 = vsel %vm1180, %v1281, %v1277
        %v1283 = vlaneseq
        %v1284 = vshrl.u32 %v1283, 7
        %v1285 = vsub.s32 %v1182, %v1284
        %v1286 = vrot.slane %v904, %v1285
        %v1287 = vsel %vm1187, %v1286, %v1282
        %v1288 = vlaneseq
        %v1289 = vshrl.u32 %v1288, 7
        %v1290 = vsub.s32 %v1189, %v1289
        %v1291 = vrot.slane %v918, %v1290
        %v1292 = vsel %vm1194, %v1291, %v1287
        %v1293 = vlaneseq
        %v1294 = vshrl.u32 %v1293, 7
        %v1295 = vsub.s32 %v1196, %v1294
        %v1296 = vrot.slane %v932, %v1295
        %v1297 = vsel %vm1201, %v1296, %v1292
        %v1298 = vlaneseq
        %v1299 = vshrl.u32 %v1298, 7
        %v1300 = vsub.s32 %v1203, %v1299
        %v1301 = vrot.slane %v946, %v1300
        %v1302 = vsel %vm1208, %v1301, %v1297
        %v1303 = vlaneseq
        %v1304 = vshrl.u32 %v1303, 7
        %v1305 = vsub.s32 %v1210, %v1304
        %v1306 = vrot.slane %v960, %v1305
        %v1307 = vsel %vm1215, %v1306, %v1302
        %v1308 = vlaneseq
        %v1309 = vshrl.u32 %v1308, 7
        %v1310 = vsub.s32 %v1217, %v1309
        %v1311 = vrot.slane %v974, %v1310
        %v1312 = vsel %vm1222, %v1311, %v1307
        %v1313 = vlaneseq
        %v1314 = vshrl.u32 %v1313, 7
        %v1315 = vsub.s32 %v1224, %v1314
        %v1316 = vrot.slane %v988, %v1315
        %v1317 = vsel %vm1229, %v1316, %v1312
        %v1318 = vlaneseq
        %v1319 = vshrl.u32 %v1318, 7
        %v1320 = vsub.s32 %v1231, %v1319
        %v1321 = vrot.slane %v1002, %v1320
        %v1322 = vsel %vm1236, %v1321, %v1317
        %v1323 = vlaneseq
        %v1324 = vshrl.u32 %v1323, 7
        %v1325 = vsub.s32 %v1238, %v1324
        %v1326 = vrot.slane %v1016, %v1325
        %v1327 = vsel %vm1243, %v1326, %v1322
        %v1328 = vlaneseq
        %v1329 = vshrl.u32 %v1328, 7
        %v1330 = vsub.s32 %v1245, %v1329
        %v1331 = vrot.slane %v1030, %v1330
        %v1332 = vsel %vm1250, %v1331, %v1327
        %1333 = vst [vmem:[%s241] sm:$0x1] %v1332
        %s1334 = sand.u32 %s125, 1
        %s1335 = scalar_lea.sflag [#allocation3], %s1334
        %s1336 = sand.u32 %s125, 1
        %s1337 = scalar_lea.vmem [#allocation2], %s1336
        %s1338 = sand.u32 %s151, 1
        %s1339 = scalar_lea.sflag [#allocation5], %s1338
        %s1340 = sand.u32 %s151, 1
        %s1341 = scalar_lea.vmem [#allocation4], %s1340
        // Predicated region
        $region37: #{tpu_custom_call.1} parent=35 // pred_check
          %p1342 = pneg %p135
        $region38: #{tpu_custom_call.1} parent=35 // pred_check_branch
          %1344 = sbr.rel (%p1342) target = $region40
        $region39: #{tpu_custom_call.1} parent=35 // pred_region
          %s1346 = ssub.s32 16, 16
          %1347 = vsyncadd %s1335, %s1346
          %s1348 = smul.addr %s23, 16
          %s1349 = scalar_lea.hbm %s4, %s1348
          %s1351 = sshll.u32 %s1337, 4
          %s1352 = int_to_ptr.vmem [resolvable:$true] %s1351
          %1354 = dma.vmem_to_hbm [thread:$0]  %s1352, 16, %s1349, %s1335
        $region40: #{tpu_custom_call.1} parent=35 // pred_fallthru
          _
        // Predicated region
        $region41: #{tpu_custom_call.1} parent=35 // pred_check
          %p1355 = pneg %p161
        $region42: #{tpu_custom_call.1} parent=35 // pred_check_branch
          %1357 = sbr.rel (%p1355) target = $region44
        $region43: #{tpu_custom_call.1} parent=35 // pred_region
          %s1359 = ssub.s32 16, 16
          %1360 = vsyncadd %s1339, %s1359
          %s1361 = smul.addr %s23, 16
          %s1362 = scalar_lea.hbm %s5, %s1361
          %s1364 = sshll.u32 %s1341, 4
          %s1365 = int_to_ptr.vmem [resolvable:$true] %s1364
          %1367 = dma.vmem_to_hbm [thread:$0]  %s1365, 16, %s1362, %s1339
        $region44: #{tpu_custom_call.1} parent=35 // pred_fallthru
          _
      $region36: #{tpu_custom_call.1} parent=5 // pred_fallthru
        _
      %p1368 = scmp.le.s32.totalorder 2, %s18
      // Predicated region
      $region45: #{tpu_custom_call.1} parent=5 // pred_check
        %p1369 = pneg %p1368
      $region46: #{tpu_custom_call.1} parent=5 // pred_check_branch
        %1371 = sbr.rel (%p1369) target = $region48
      $region47: #{tpu_custom_call.1} parent=5 // pred_region
        %s1372 = ssub.s32 %s18, 2
        // Predicated region
        $region49: #{tpu_custom_call.1} parent=47 // pred_check
          %p1373 = pneg %p141
        $region50: #{tpu_custom_call.1} parent=47 // pred_check_branch
          %1375 = sbr.rel (%p1373) target = $region52
        $region51: #{tpu_custom_call.1} parent=47 // pred_region
          %s1376 = sand.u32 %s126, 1
          %s1377 = scalar_lea.sflag [#allocation3], %s1376
          %s1378 = sand.u32 %s126, 1
          %s1379 = scalar_lea.vmem [#allocation2], %s1378
          %1380 = dma.done %s1377, 16
        $region52: #{tpu_custom_call.1} parent=47 // pred_fallthru
          _
        // Predicated region
        $region53: #{tpu_custom_call.1} parent=47 // pred_check
          %p1381 = pneg %p167
        $region54: #{tpu_custom_call.1} parent=47 // pred_check_branch
          %1383 = sbr.rel (%p1381) target = $region56
        $region55: #{tpu_custom_call.1} parent=47 // pred_region
          %s1384 = sand.u32 %s152, 1
          %s1385 = scalar_lea.sflag [#allocation5], %s1384
          %s1386 = sand.u32 %s152, 1
          %s1387 = scalar_lea.vmem [#allocation4], %s1386
          %1388 = dma.done %s1385, 16
        $region56: #{tpu_custom_call.1} parent=47 // pred_fallthru
          _
      $region48: #{tpu_custom_call.1} parent=5 // pred_fallthru
        _
    $region6: #{tpu_custom_call.1} parent=1 // loop_footer
      %s22 = sadd.s32 1, %s18
    $region7: #{tpu_custom_call.1} parent=1 // loop_footer_branch
      %17 = sbr.rel target = $region3
    $region8: #{tpu_custom_call.1} parent=1 // loop_exit
      _
    %1389 = vsyncpa [#allocation3], 1
    %s1390 = scalar_lea.sflag [#allocation3], 1
    %1391 = vsyncpa %s1390, 1
    %1392 = vsyncpa [#allocation5], 1
    %s1393 = scalar_lea.sflag [#allocation5], 1
    %1394 = vsyncpa %s1393, 1

</llo_original>
